<compile_context>
chip_gen: v5e
topology: v5e:2x2
jax: 0.10.0
libtpu: 0.0.40
codegen_flags: <defaults>
</compile_context>

<pallas_src>
import functools

import jax
import jax.numpy as jnp
from jax.experimental import pallas as pl
from jax.experimental.pallas import tpu as pltpu

_NEG_BIG = -1e30  # finite "-inf": avoids inf-inf NaNs in the online max/sum updates


def _label_smooth_ce_kernel(logits_ref, labels_ref, lab_ref, nlab_ref, normt_ref,
                            cbias_ref, loss_ref,
                            m_lg, z_lg, m_s, z_s, num_s,
                            *, epsilon):
    k = pl.program_id(1)
    nv = pl.num_programs(1)

    @pl.when(k == 0)
    def _init():
        m_lg[...] = jnp.full_like(m_lg, _NEG_BIG)
        m_s[...] = jnp.full_like(m_s, _NEG_BIG)
        z_lg[...] = jnp.zeros_like(z_lg)
        z_s[...] = jnp.zeros_like(z_s)
        num_s[...] = jnp.zeros_like(num_s)

    lg = logits_ref[...]                              # (TB, TV) f32; V padding already _NEG_BIG
    tb, tv = lg.shape

    # similarity for this V tile: bf16 operands on the MXU, f32 accumulate (1/t folded in)
    s = jnp.dot(nlab_ref[...], normt_ref[...], preferred_element_type=jnp.float32)
    s = s + cbias_ref[...]                            # padded V columns -> -BIG (broadcast add)
    is_label = (jax.lax.broadcasted_iota(jnp.int32, (tb, tv), 1)
                == (labels_ref[...] - k * tv))
    s = jnp.where(is_label, _NEG_BIG, s)              # PyTorch: soft_labels[idx, labels] = -inf

    # ---- online logsumexp of the logits ----
    m_old = m_lg[...]
    m_new = jnp.maximum(m_old, jnp.max(lg, axis=-1, keepdims=True))
    z_lg[...] = (jnp.exp(m_old - m_new) * z_lg[...]
                 + jnp.sum(jnp.exp(lg - m_new), axis=-1, keepdims=True))
    m_lg[...] = m_new

    # ---- online softmax of s (soft labels) + logit-weighted numerator ----
    ms_old = m_s[...]
    ms_new = jnp.maximum(ms_old, jnp.max(s, axis=-1, keepdims=True))
    alpha = jnp.exp(ms_old - ms_new)
    p = jnp.exp(s - ms_new)                           # exactly 0 at label / padded columns
    z_s[...] = alpha * z_s[...] + jnp.sum(p, axis=-1, keepdims=True)
    num_s[...] = alpha * num_s[...] + jnp.sum(p * lg, axis=-1, keepdims=True)
    m_s[...] = ms_new

    @pl.when(k == nv - 1)
    def _finalize():
        lse = m_lg[...] + jnp.log(z_lg[...])
        weighted = num_s[...] / jnp.maximum(z_s[...], jnp.float32(1e-30))  # NaN-safe
        loss_ref[...] = (lse
                         - jnp.float32(1.0 - epsilon) * lab_ref[...]
                         - jnp.float32(epsilon) * weighted)


def _round_up(x, m):
    return (x + m - 1) // m * m


def _device_kind():
    try:
        return jax.devices()[0].device_kind.lower()
    except Exception:
        return ""


def _tpu_vmem_capacity_bytes():
    try:
        return int(pltpu.get_tpu_info().vmem_capacity_bytes)
    except Exception:
        return 64 * 1024 * 1024  # conservative fallback (v7x per-TC floor)


def label_smooth_ce(logits, labels, word_emb_tab, *, epsilon=0.2, t=0.5,
                    reduction="mean"):
    """JAX/Pallas equivalent of LabelSmoothCE(epsilon, reduction, word_emb_tab, t)."""
    if reduction not in ("mean", "sum", "none"):
        raise ValueError(f"unsupported reduction: {reduction!r}")

    B, V = logits.shape
    D = word_emb_tab.shape[-1]

    logits = logits.astype(jnp.float32)               # PyTorch: logits.float()
    labels = labels.astype(jnp.int32)

    # __init__ glue: row-normalized embedding table (the V x V sim matrix is never built)
    norm = word_emb_tab.astype(jnp.float32)
    norm = norm / jnp.maximum(jnp.linalg.norm(norm, axis=-1, keepdims=True), 1e-12)
    nlab = jnp.take(norm, labels, axis=0) * jnp.float32(1.0 / t)      # (B, D), 1/t folded in
    lab_logit = jnp.take_along_axis(logits, labels[:, None], axis=1)  # (B, 1) label logits

    kind = _device_kind()
    vmem_cap = _tpu_vmem_capacity_bytes()

    # ---- tiling (generation-aware) ----
    if B >= 256:
        TB = 128 if "v5" in kind else 256              # v5e: 128-wide MXU, tighter VMEM
    elif B >= 128:
        TB = 128
    else:
        TB = _round_up(B, 16) if B > 8 else _round_up(B, 8)
    B_pad = _round_up(B, TB)
    nb = B_pad // TB
    if "v7" in kind and nb == 1 and B >= 32:           # v7x: 2 TCs -> want nb >= 2
        TB = _round_up((B + 1) // 2, 16)
        B_pad = _round_up(B, TB)
        nb = B_pad // TB

    D_pad = _round_up(D, 128)

    tile_budget = min(vmem_cap // 2, 64 * 1024 * 1024)          # 32 MiB (v7x) / 64 MiB (v5e/v6e)
    vmem_limit = int(min(vmem_cap * 7 // 8, tile_budget + 32 * 1024 * 1024))

    def _working_set(tv):
        per_step = tv * (TB * 4 + D_pad * 2 + 8 * 4)   # logits f32 + norm^T bf16 + col bias
        resident = TB * (D_pad * 2 + 4 + 4 + 4)        # nlab bf16 + labels + label logit + out
        scratch = 5 * TB * 128 * 4                     # five (TB,1) f32 accumulators (lane-padded)
        return 2 * per_step + 2 * resident + scratch

    TV = 2048
    while TV > 256 and _working_set(TV) > tile_budget:
        TV //= 2
    if V <= TV:
        TV = _round_up(V, 128)
    V_pad = _round_up(V, TV)
    nv = V_pad // TV

    # ---- padded operands (bf16 for the MXU/HBM similarity streams, f32 logits) ----
    logits_p = jnp.pad(logits, ((0, B_pad - B), (0, V_pad - V)), constant_values=_NEG_BIG)
    labels_p = jnp.pad(labels[:, None], ((0, B_pad - B), (0, 0)))
    lab_p = jnp.pad(lab_logit, ((0, B_pad - B), (0, 0)))
    nlab_p = jnp.pad(nlab, ((0, B_pad - B), (0, D_pad - D))).astype(jnp.bfloat16)
    normt_p = jnp.pad(norm.T, ((0, D_pad - D), (0, V_pad - V))).astype(jnp.bfloat16)
    cbias_p = jnp.where(jnp.arange(V_pad) < V, 0.0, _NEG_BIG).astype(jnp.float32)[None, :]

    kernel = functools.partial(_label_smooth_ce_kernel, epsilon=float(epsilon))

    cost = pl.CostEstimate(
        flops=int(2 * B_pad * D_pad * V_pad + 10 * B_pad * V_pad),
        transcendentals=int(2 * B_pad * V_pad),
        bytes_accessed=int(logits_p.size * 4 + nb * normt_p.size * 2 + nlab_p.size * 2
                           + nb * cbias_p.size * 4 + labels_p.size * 4
                           + lab_p.size * 4 + B_pad * 4),
    )

    per_row = pl.pallas_call(
        kernel,
        out_shape=jax.ShapeDtypeStruct((B_pad, 1), jnp.float32),
        grid_spec=pltpu.PrefetchScalarGridSpec(
            num_scalar_prefetch=0,
            grid=(nb, nv),                                        # V (reduction) axis innermost
            in_specs=[
                pl.BlockSpec((TB, TV), lambda i, k: (i, k)),        # logits tile (f32)
                pl.BlockSpec((TB, 1), lambda i, k: (i, 0)),         # labels (resident per B tile)
                pl.BlockSpec((TB, 1), lambda i, k: (i, 0)),         # logits[label] (resident)
                pl.BlockSpec((TB, D_pad), lambda i, k: (i, 0)),     # norm[labels]/t (bf16, resident)
                pl.BlockSpec((D_pad, TV), lambda i, k: (0, k)),     # norm^T tile (bf16)
                pl.BlockSpec((1, TV), lambda i, k: (0, k)),         # column-validity bias
            ],
            out_specs=pl.BlockSpec((TB, 1), lambda i, k: (i, 0)),
            scratch_shapes=[pltpu.VMEM((TB, 1), jnp.float32) for _ in range(5)],
        ),
        compiler_params=pltpu.CompilerParams(
            dimension_semantics=("parallel", "arbitrary"),
            vmem_limit_bytes=vmem_limit),
        cost_estimate=cost,
    )(logits_p, labels_p, lab_p, nlab_p, normt_p, cbias_p)

    loss = per_row[:B, 0]
    if reduction == "mean":
        return jnp.sum(loss) / jnp.float32(B)
    if reduction == "sum":
        return jnp.sum(loss)
    return loss                                                    # 'none': per-sample loss


def _reference(logits, labels, word_emb_tab, epsilon=0.2, t=0.5, reduction="mean"):
    """Pure-JAX reference mirroring the PyTorch forward (sanity check)."""
    logits = logits.astype(jnp.float32)
    norm = word_emb_tab.astype(jnp.float32)
    norm = norm / jnp.maximum(jnp.linalg.norm(norm, axis=-1, keepdims=True), 1e-12)
    sim = jnp.matmul(norm, norm.T, precision=jax.lax.Precision.HIGHEST)
    soft = sim[labels]
    B = labels.shape[0]
    idx = jnp.arange(B)
    soft = soft.at[idx, labels].set(-jnp.inf)
    soft = jax.nn.softmax(soft / t, axis=-1) * epsilon
    soft = soft.at[idx, labels].set(1.0 - epsilon)
    logs = jax.nn.log_softmax(logits, axis=-1)
    loss = -jnp.sum(logs * soft, axis=-1)
    if reduction == "mean":
        return loss.sum() / B
    if reduction == "sum":
        return loss.sum()
    return loss


if __name__ == "__main__":
    key = jax.random.PRNGKey(0)

    # case 1: tiny batch, single V tile, per-sample ('none') reduction
    k1, k2, k3 = jax.random.split(jax.random.fold_in(key, 0), 3)
    B, V, D = 6, 700, 32
    logits = jax.random.normal(k1, (B, V), dtype=jnp.float32)
    labels = jax.random.randint(k2, (B,), 0, V, dtype=jnp.int32)
    emb = jax.random.normal(k3, (V, D), dtype=jnp.float32)
    out = jax.block_until_ready(label_smooth_ce(logits, labels, emb, reduction="none"))
    ref = _reference(logits, labels, emb, reduction="none")
    assert jnp.allclose(out, ref, rtol=2e-3, atol=2e-3), (out, ref)

    # case 2: multiple V tiles (online accumulation path), B padding, 'mean' reduction
    k1, k2, k3 = jax.random.split(jax.random.fold_in(key, 1), 3)
    B, V, D = 24, 2900, 48
    logits = jax.random.normal(k1, (B, V), dtype=jnp.float32)
    labels = jax.random.randint(k2, (B,), 0, V, dtype=jnp.int32)
    emb = jax.random.normal(k3, (V, D), dtype=jnp.float32)
    out = jax.block_until_ready(label_smooth_ce(logits, labels, emb, reduction="mean"))
    ref = _reference(logits, labels, emb, reduction="mean")
    assert jnp.allclose(out, ref, rtol=2e-3, atol=2e-3), (out, ref)

    print("KERNEL_OK")
</pallas_src>

<mosaic_0001>
module attributes {stable_mosaic.version = 11 : i64} {
  func.func @_label_smooth_ce_kernel(%arg0: i32, %arg1: i32, %arg2: memref<8x768xf32, #tpu.memory_space<vmem>>, %arg3: memref<8x1xi32, #tpu.memory_space<vmem>>, %arg4: memref<8x1xf32, #tpu.memory_space<vmem>>, %arg5: memref<8x128xbf16, #tpu.memory_space<vmem>>, %arg6: memref<128x768xbf16, #tpu.memory_space<vmem>>, %arg7: memref<1x768xf32, #tpu.memory_space<vmem>>, %arg8: memref<8x1xf32, #tpu.memory_space<vmem>>, %arg9: memref<8x1xf32, #tpu.memory_space<vmem>>, %arg10: memref<8x1xf32, #tpu.memory_space<vmem>>, %arg11: memref<8x1xf32, #tpu.memory_space<vmem>>, %arg12: memref<8x1xf32, #tpu.memory_space<vmem>>, %arg13: memref<8x1xf32, #tpu.memory_space<vmem>>) attributes {dimension_semantics = [#tpu.dimension_semantics<parallel>, #tpu.dimension_semantics<arbitrary>], iteration_bounds = array<i64: 1, 1>, scalar_prefetch = 0 : i64, scratch_operands = 5 : i64, tpu.core_type = #tpu.core_type<tc>, window_params = [{transform_indices = @transform_0, window_bounds = array<i64: 8, 768>}, {transform_indices = @transform_1, window_bounds = array<i64: 8, 1>}, {transform_indices = @transform_2, window_bounds = array<i64: 8, 1>}, {transform_indices = @transform_3, window_bounds = array<i64: 8, 128>}, {transform_indices = @transform_4, window_bounds = array<i64: 128, 768>}, {transform_indices = @transform_5, window_bounds = array<i64: 1, 768>}, {transform_indices = @transform_6, window_bounds = array<i64: 8, 1>}]} {
    %c0_i32 = arith.constant 0 : i32
    %0 = arith.cmpi eq, %arg1, %c0_i32 : i32
    %1 = arith.extui %0 : i1 to i32
    %c0_i32_0 = arith.constant 0 : i32
    %2 = arith.cmpi ne, %1, %c0_i32_0 : i32
    scf.if %2 {
      %cst_38 = arith.constant -1.000000e+30 : f32
      %61 = vector.broadcast %cst_38 : f32 to vector<8x1xf32>
      %c0_39 = arith.constant 0 : index
      %c0_40 = arith.constant 0 : index
      %62 = vector.load %arg9[%c0_39, %c0_40] : memref<8x1xf32, #tpu.memory_space<vmem>>, vector<8x1xf32>
      tpu.vector_store %arg9[%c0_39, %c0_40], %61 {strides = array<i32>} : memref<8x1xf32, #tpu.memory_space<vmem>>, vector<8x1xf32>,
      %cst_41 = arith.constant -1.000000e+30 : f32
      %63 = vector.broadcast %cst_41 : f32 to vector<8x1xf32>
      %c0_42 = arith.constant 0 : index
      %c0_43 = arith.constant 0 : index
      %64 = vector.load %arg11[%c0_42, %c0_43] : memref<8x1xf32, #tpu.memory_space<vmem>>, vector<8x1xf32>
      tpu.vector_store %arg11[%c0_42, %c0_43], %63 {strides = array<i32>} : memref<8x1xf32, #tpu.memory_space<vmem>>, vector<8x1xf32>,
      %cst_44 = arith.constant 0.000000e+00 : f32
      %65 = vector.broadcast %cst_44 : f32 to vector<8x1xf32>
      %c0_45 = arith.constant 0 : index
      %c0_46 = arith.constant 0 : index
      %66 = vector.load %arg10[%c0_45, %c0_46] : memref<8x1xf32, #tpu.memory_space<vmem>>, vector<8x1xf32>
      tpu.vector_store %arg10[%c0_45, %c0_46], %65 {strides = array<i32>} : memref<8x1xf32, #tpu.memory_space<vmem>>, vector<8x1xf32>,
      %cst_47 = arith.constant 0.000000e+00 : f32
      %67 = vector.broadcast %cst_47 : f32 to vector<8x1xf32>
      %c0_48 = arith.constant 0 : index
      %c0_49 = arith.constant 0 : index
      %68 = vector.load %arg12[%c0_48, %c0_49] : memref<8x1xf32, #tpu.memory_space<vmem>>, vector<8x1xf32>
      tpu.vector_store %arg12[%c0_48, %c0_49], %67 {strides = array<i32>} : memref<8x1xf32, #tpu.memory_space<vmem>>, vector<8x1xf32>,
      %cst_50 = arith.constant 0.000000e+00 : f32
      %69 = vector.broadcast %cst_50 : f32 to vector<8x1xf32>
      %c0_51 = arith.constant 0 : index
      %c0_52 = arith.constant 0 : index
      %70 = vector.load %arg13[%c0_51, %c0_52] : memref<8x1xf32, #tpu.memory_space<vmem>>, vector<8x1xf32>
      tpu.vector_store %arg13[%c0_51, %c0_52], %69 {strides = array<i32>} : memref<8x1xf32, #tpu.memory_space<vmem>>, vector<8x1xf32>,
    } else {
    }
    %c0 = arith.constant 0 : index
    %c0_1 = arith.constant 0 : index
    %3 = vector.load %arg2[%c0, %c0_1] : memref<8x768xf32, #tpu.memory_space<vmem>>, vector<8x768xf32>
    %c0_2 = arith.constant 0 : index
    %c0_3 = arith.constant 0 : index
    %4 = vector.load %arg5[%c0_2, %c0_3] : memref<8x128xbf16, #tpu.memory_space<vmem>>, vector<8x128xbf16>
    %c0_4 = arith.constant 0 : index
    %c0_5 = arith.constant 0 : index
    %5 = vector.load %arg6[%c0_4, %c0_5] : memref<128x768xbf16, #tpu.memory_space<vmem>>, vector<128x768xbf16>
    %cst = arith.constant dense<0.000000e+00> : vector<8x768xf32>
    %6 = tpu.matmul %4, %5, %cst {dimension_numbers = #tpu.dot_dimension_numbers<[1], [0], [0], [1], [0, 0, 1, 1], [], []>} : vector<8x128xbf16>, vector<128x768xbf16>, vector<8x768xf32> -> vector<8x768xf32>
    %c0_6 = arith.constant 0 : index
    %c0_7 = arith.constant 0 : index
    %7 = vector.load %arg7[%c0_6, %c0_7] : memref<1x768xf32, #tpu.memory_space<vmem>>, vector<1x768xf32>
    %8 = vector.broadcast %7 : vector<1x768xf32> to vector<8x768xf32>
    %9 = arith.addf %6, %8 : vector<8x768xf32>
    %10 = tpu.iota {dimensions = array<i32: 1>} : vector<8x768xi32>
    %c0_8 = arith.constant 0 : index
    %c0_9 = arith.constant 0 : index
    %11 = vector.load %arg3[%c0_8, %c0_9] : memref<8x1xi32, #tpu.memory_space<vmem>>, vector<8x1xi32>
    %c768_i32 = arith.constant 768 : i32
    %12 = arith.muli %arg1, %c768_i32 : i32
    %13 = vector.broadcast %12 : i32 to vector<8x1xi32>
    %14 = arith.subi %11, %13 : vector<8x1xi32>
    %15 = vector.broadcast %14 : vector<8x1xi32> to vector<8x768xi32>
    %16 = arith.cmpi eq, %10, %15 : vector<8x768xi32>
    %cst_10 = arith.constant -1.000000e+30 : f32
    %17 = vector.broadcast %cst_10 : f32 to vector<8x768xf32>
    %18 = arith.select %16, %17, %9 : vector<8x768xi1>, vector<8x768xf32>
    %c0_11 = arith.constant 0 : index
    %c0_12 = arith.constant 0 : index
    %19 = vector.load %arg9[%c0_11, %c0_12] : memref<8x1xf32, #tpu.memory_space<vmem>>, vector<8x1xf32>
    %cst_13 = arith.constant dense<0xFF800000> : vector<8xf32>
    %20 = vector.multi_reduction <maximumf>, %3, %cst_13 [1] : vector<8x768xf32> to vector<8xf32>
    %21 = vector.shape_cast %20 : vector<8xf32> to vector<8x1xf32>
    %22 = arith.maximumf %19, %21 : vector<8x1xf32>
    %23 = arith.subf %19, %22 : vector<8x1xf32>
    %24 = math.exp %23 : vector<8x1xf32>
    %c0_14 = arith.constant 0 : index
    %c0_15 = arith.constant 0 : index
    %25 = vector.load %arg10[%c0_14, %c0_15] : memref<8x1xf32, #tpu.memory_space<vmem>>, vector<8x1xf32>
    %26 = arith.mulf %24, %25 : vector<8x1xf32>
    %27 = vector.broadcast %22 : vector<8x1xf32> to vector<8x768xf32>
    %28 = arith.subf %3, %27 : vector<8x768xf32>
    %29 = math.exp %28 : vector<8x768xf32>
    %cst_16 = arith.constant dense<0.000000e+00> : vector<8xf32>
    %30 = vector.multi_reduction <add>, %29, %cst_16 [1] : vector<8x768xf32> to vector<8xf32>
    %31 = vector.shape_cast %30 : vector<8xf32> to vector<8x1xf32>
    %32 = arith.addf %26, %31 : vector<8x1xf32>
    %c0_17 = arith.constant 0 : index
    %c0_18 = arith.constant 0 : index
    %33 = vector.load %arg10[%c0_17, %c0_18] : memref<8x1xf32, #tpu.memory_space<vmem>>, vector<8x1xf32>
    tpu.vector_store %arg10[%c0_17, %c0_18], %32 {strides = array<i32>} : memref<8x1xf32, #tpu.memory_space<vmem>>, vector<8x1xf32>,
    %c0_19 = arith.constant 0 : index
    %c0_20 = arith.constant 0 : index
    %34 = vector.load %arg9[%c0_19, %c0_20] : memref<8x1xf32, #tpu.memory_space<vmem>>, vector<8x1xf32>
    tpu.vector_store %arg9[%c0_19, %c0_20], %22 {strides = array<i32>} : memref<8x1xf32, #tpu.memory_space<vmem>>, vector<8x1xf32>,
    %c0_21 = arith.constant 0 : index
    %c0_22 = arith.constant 0 : index
    %35 = vector.load %arg11[%c0_21, %c0_22] : memref<8x1xf32, #tpu.memory_space<vmem>>, vector<8x1xf32>
    %cst_23 = arith.constant dense<0xFF800000> : vector<8xf32>
    %36 = vector.multi_reduction <maximumf>, %18, %cst_23 [1] : vector<8x768xf32> to vector<8xf32>
    %37 = vector.shape_cast %36 : vector<8xf32> to vector<8x1xf32>
    %38 = arith.maximumf %35, %37 : vector<8x1xf32>
    %39 = arith.subf %35, %38 : vector<8x1xf32>
    %40 = math.exp %39 : vector<8x1xf32>
    %41 = vector.broadcast %38 : vector<8x1xf32> to vector<8x768xf32>
    %42 = arith.subf %18, %41 : vector<8x768xf32>
    %43 = math.exp %42 : vector<8x768xf32>
    %c0_24 = arith.constant 0 : index
    %c0_25 = arith.constant 0 : index
    %44 = vector.load %arg12[%c0_24, %c0_25] : memref<8x1xf32, #tpu.memory_space<vmem>>, vector<8x1xf32>
    %45 = arith.mulf %40, %44 : vector<8x1xf32>
    %cst_26 = arith.constant dense<0.000000e+00> : vector<8xf32>
    %46 = vector.multi_reduction <add>, %43, %cst_26 [1] : vector<8x768xf32> to vector<8xf32>
    %47 = vector.shape_cast %46 : vector<8xf32> to vector<8x1xf32>
    %48 = arith.addf %45, %47 : vector<8x1xf32>
    %c0_27 = arith.constant 0 : index
    %c0_28 = arith.constant 0 : index
    %49 = vector.load %arg12[%c0_27, %c0_28] : memref<8x1xf32, #tpu.memory_space<vmem>>, vector<8x1xf32>
    tpu.vector_store %arg12[%c0_27, %c0_28], %48 {strides = array<i32>} : memref<8x1xf32, #tpu.memory_space<vmem>>, vector<8x1xf32>,
    %c0_29 = arith.constant 0 : index
    %c0_30 = arith.constant 0 : index
    %50 = vector.load %arg13[%c0_29, %c0_30] : memref<8x1xf32, #tpu.memory_space<vmem>>, vector<8x1xf32>
    %51 = arith.mulf %40, %50 : vector<8x1xf32>
    %52 = arith.mulf %43, %3 : vector<8x768xf32>
    %cst_31 = arith.constant dense<0.000000e+00> : vector<8xf32>
    %53 = vector.multi_reduction <add>, %52, %cst_31 [1] : vector<8x768xf32> to vector<8xf32>
    %54 = vector.shape_cast %53 : vector<8xf32> to vector<8x1xf32>
    %55 = arith.addf %51, %54 : vector<8x1xf32>
    %c0_32 = arith.constant 0 : index
    %c0_33 = arith.constant 0 : index
    %56 = vector.load %arg13[%c0_32, %c0_33] : memref<8x1xf32, #tpu.memory_space<vmem>>, vector<8x1xf32>
    tpu.vector_store %arg13[%c0_32, %c0_33], %55 {strides = array<i32>} : memref<8x1xf32, #tpu.memory_space<vmem>>, vector<8x1xf32>,
    %c0_34 = arith.constant 0 : index
    %c0_35 = arith.constant 0 : index
    %57 = vector.load %arg11[%c0_34, %c0_35] : memref<8x1xf32, #tpu.memory_space<vmem>>, vector<8x1xf32>
    tpu.vector_store %arg11[%c0_34, %c0_35], %38 {strides = array<i32>} : memref<8x1xf32, #tpu.memory_space<vmem>>, vector<8x1xf32>,
    %c0_i32_36 = arith.constant 0 : i32
    %58 = arith.cmpi eq, %arg1, %c0_i32_36 : i32
    %59 = arith.extui %58 : i1 to i32
    %c0_i32_37 = arith.constant 0 : i32
    %60 = arith.cmpi ne, %59, %c0_i32_37 : i32
    scf.if %60 {
      %c0_38 = arith.constant 0 : index
      %c0_39 = arith.constant 0 : index
      %61 = vector.load %arg9[%c0_38, %c0_39] : memref<8x1xf32, #tpu.memory_space<vmem>>, vector<8x1xf32>
      %c0_40 = arith.constant 0 : index
      %c0_41 = arith.constant 0 : index
      %62 = vector.load %arg10[%c0_40, %c0_41] : memref<8x1xf32, #tpu.memory_space<vmem>>, vector<8x1xf32>
      %63 = math.log %62 : vector<8x1xf32>
      %64 = arith.addf %61, %63 : vector<8x1xf32>
      %c0_42 = arith.constant 0 : index
      %c0_43 = arith.constant 0 : index
      %65 = vector.load %arg13[%c0_42, %c0_43] : memref<8x1xf32, #tpu.memory_space<vmem>>, vector<8x1xf32>
      %c0_44 = arith.constant 0 : index
      %c0_45 = arith.constant 0 : index
      %66 = vector.load %arg12[%c0_44, %c0_45] : memref<8x1xf32, #tpu.memory_space<vmem>>, vector<8x1xf32>
      %cst_46 = arith.constant 1.000000e-30 : f32
      %67 = vector.broadcast %cst_46 : f32 to vector<8x1xf32>
      %68 = arith.maximumf %66, %67 : vector<8x1xf32>
      %69 = arith.divf %65, %68 : vector<8x1xf32>
      %c0_47 = arith.constant 0 : index
      %c0_48 = arith.constant 0 : index
      %70 = vector.load %arg4[%c0_47, %c0_48] : memref<8x1xf32, #tpu.memory_space<vmem>>, vector<8x1xf32>
      %cst_49 = arith.constant 8.000000e-01 : f32
      %71 = vector.broadcast %cst_49 : f32 to vector<8x1xf32>
      %72 = arith.mulf %71, %70 : vector<8x1xf32>
      %73 = arith.subf %64, %72 : vector<8x1xf32>
      %cst_50 = arith.constant 2.000000e-01 : f32
      %74 = vector.broadcast %cst_50 : f32 to vector<8x1xf32>
      %75 = arith.mulf %74, %69 : vector<8x1xf32>
      %76 = arith.subf %73, %75 : vector<8x1xf32>
      %c0_51 = arith.constant 0 : index
      %c0_52 = arith.constant 0 : index
      %77 = vector.load %arg8[%c0_51, %c0_52] : memref<8x1xf32, #tpu.memory_space<vmem>>, vector<8x1xf32>
      tpu.vector_store %arg8[%c0_51, %c0_52], %76 {strides = array<i32>} : memref<8x1xf32, #tpu.memory_space<vmem>>, vector<8x1xf32>,
    } else {
    }
    return
  }
  func.func @transform_0(%arg0: i32, %arg1: i32) -> (i32, i32) {
    %c0_i32 = arith.constant 0 : i32
    return %arg0, %arg1 : i32, i32
  }
  func.func @transform_1(%arg0: i32, %arg1: i32) -> (i32, i32) {
    %c0_i32 = arith.constant 0 : i32
    %c0_i32_0 = arith.constant 0 : i32
    return %arg0, %c0_i32 : i32, i32
  }
  func.func @transform_2(%arg0: i32, %arg1: i32) -> (i32, i32) {
    %c0_i32 = arith.constant 0 : i32
    %c0_i32_0 = arith.constant 0 : i32
    return %arg0, %c0_i32 : i32, i32
  }
  func.func @transform_3(%arg0: i32, %arg1: i32) -> (i32, i32) {
    %c0_i32 = arith.constant 0 : i32
    %c0_i32_0 = arith.constant 0 : i32
    return %arg0, %c0_i32 : i32, i32
  }
  func.func @transform_4(%arg0: i32, %arg1: i32) -> (i32, i32) {
    %c0_i32 = arith.constant 0 : i32
    %c0_i32_0 = arith.constant 0 : i32
    return %c0_i32, %arg1 : i32, i32
  }
  func.func @transform_5(%arg0: i32, %arg1: i32) -> (i32, i32) {
    %c0_i32 = arith.constant 0 : i32
    %c0_i32_0 = arith.constant 0 : i32
    return %c0_i32, %arg1 : i32, i32
  }
  func.func @transform_6(%arg0: i32, %arg1: i32) -> (i32, i32) {
    %c0_i32 = arith.constant 0 : i32
    %c0_i32_0 = arith.constant 0 : i32
    return %arg0, %c0_i32 : i32, i32
  }
}

</mosaic_0001>

<llo_original>
// kernel: tpu_custom_call.1
$region0: #{tpu_custom_call.1}
  #allocation0 [shape = 'u32[]', space=smem, size = 0x4, offset = 0x4, fixed_abs, tag = 'smem constant byte address 0x4 - core index']
  #allocation1 [shape = 'u32[72,128]{1,0:T(1,128)}', space=vmem, size = 0x9000, scoped, tag = 'internal scratch']
  #allocation2 [shape = 'f32[8,1]{1,0:T(8,128)}', space=vmem, size = 0x1000, scoped, tag = 'scratch operand']
  #allocation3 [shape = 'f32[8,1]{1,0:T(8,128)}', space=vmem, size = 0x1000, scoped, tag = 'scratch operand']
  #allocation4 [shape = 'f32[8,1]{1,0:T(8,128)}', space=vmem, size = 0x1000, scoped, tag = 'scratch operand']
  #allocation5 [shape = 'f32[8,1]{1,0:T(8,128)}', space=vmem, size = 0x1000, scoped, tag = 'scratch operand']
  #allocation6 [shape = 'f32[8,1]{1,0:T(8,128)}', space=vmem, size = 0x1000, scoped, tag = 'scratch operand']
  %s0 = inlined_call_operand.hbm [shape: f32[8,768], index: 0, kind: input, shape index: {}]
  %s1 = inlined_call_operand.vmem [shape: s32[8,1], index: 1, kind: input, shape index: {}]
  %s2 = inlined_call_operand.vmem [shape: f32[8,1], index: 2, kind: input, shape index: {}]
  %s3 = inlined_call_operand.vmem [shape: bf16[8,128], index: 3, kind: input, shape index: {}]
  %s4 = inlined_call_operand.hbm [shape: bf16[128,768], index: 4, kind: input, shape index: {}]
  %s5 = inlined_call_operand.vmem [shape: f32[1,768], index: 5, kind: input, shape index: {}]
  %s6 = inlined_call_operand.vmem [shape: f32[8,1], index: 6, kind: output, shape index: {}]
  %s7 = sld [smem:[#allocation0]]
  $region50: #{tpu_custom_call.1} parent=0
    _
  %s9 = ssub.s32 1, %s7
  %s10 = scalar_select 0, %s9, %s7
  $region1: #{tpu_custom_call.1} parent=0
    #allocation7 [shape = 'u8[24576]{0}', space=vmem, size = 0x6000, scoped, tag = 'input window, operand 0, single buffered']
    #allocation8 [shape = 's32[1]{0}', space=sflag, size = 0x4, scoped, tag = 'scoped memory for tpu_custom_call.1']
    #allocation9 [shape = 'u8[196608]{0}', space=vmem, size = 0x30000, scoped, tag = 'input window, operand 4, single buffered']
    #allocation10 [shape = 's32[1]{0}', space=sflag, size = 0x4, scoped, tag = 'scoped memory for tpu_custom_call.1']
    %11 = vsyncpa [#allocation8], 0
    %12 = vsyncpa [#allocation10], 0
    // Predicated region
    $region2: #{tpu_custom_call.1} parent=1 // pred_check
      _
    $region3: #{tpu_custom_call.1} parent=1 // pred_check_branch
      %14 = sbr.rel (0) target = $region5
    $region4: #{tpu_custom_call.1} parent=1 // pred_region
      %16 = vsyncadd [#allocation8], 0
      %s18 = sshll.u32 %s0, 4
      %s19 = int_to_ptr.hbm [resolvable:$true] %s18
      %s20 = sshll.u32 [#allocation7], 4
      %s21 = int_to_ptr.vmem [resolvable:$true] %s20
      %23 = dma.hbm_to_vmem [thread:$0]  %s19, 768, %s21, [#allocation8]
    $region5: #{tpu_custom_call.1} parent=1 // pred_fallthru
      _
    // Predicated region
    $region6: #{tpu_custom_call.1} parent=1 // pred_check
      _
    $region7: #{tpu_custom_call.1} parent=1 // pred_check_branch
      %25 = sbr.rel (0) target = $region9
    $region8: #{tpu_custom_call.1} parent=1 // pred_region
      _
    $region9: #{tpu_custom_call.1} parent=1 // pred_fallthru
      _
    // Predicated region
    $region10: #{tpu_custom_call.1} parent=1 // pred_check
      _
    $region11: #{tpu_custom_call.1} parent=1 // pred_check_branch
      %27 = sbr.rel (0) target = $region13
    $region12: #{tpu_custom_call.1} parent=1 // pred_region
      _
    $region13: #{tpu_custom_call.1} parent=1 // pred_fallthru
      _
    // Predicated region
    $region14: #{tpu_custom_call.1} parent=1 // pred_check
      _
    $region15: #{tpu_custom_call.1} parent=1 // pred_check_branch
      %29 = sbr.rel (0) target = $region17
    $region16: #{tpu_custom_call.1} parent=1 // pred_region
      _
    $region17: #{tpu_custom_call.1} parent=1 // pred_fallthru
      _
    // Predicated region
    $region18: #{tpu_custom_call.1} parent=1 // pred_check
      _
    $region19: #{tpu_custom_call.1} parent=1 // pred_check_branch
      %31 = sbr.rel (0) target = $region21
    $region20: #{tpu_custom_call.1} parent=1 // pred_region
      %33 = vsyncadd [#allocation10], 0
      %s34 = sshll.u32 %s4, 4
      %s35 = int_to_ptr.hbm [resolvable:$true] %s34
      %s36 = sshll.u32 [#allocation9], 4
      %s37 = int_to_ptr.vmem [resolvable:$true] %s36
      %42 = dma.hbm_to_vmem [thread:$0]  %s35, 6144, %s37, [#allocation10], 384, 384, 24
    $region21: #{tpu_custom_call.1} parent=1 // pred_fallthru
      _
    // Predicated region
    $region22: #{tpu_custom_call.1} parent=1 // pred_check
      _
    $region23: #{tpu_custom_call.1} parent=1 // pred_check_branch
      %44 = sbr.rel (0) target = $region25
    $region24: #{tpu_custom_call.1} parent=1 // pred_region
      _
    $region25: #{tpu_custom_call.1} parent=1 // pred_fallthru
      _
    // Predicated region
    $region26: #{tpu_custom_call.1} parent=1 // pred_check
      _
    $region27: #{tpu_custom_call.1} parent=1 // pred_check_branch
      %46 = sbr.rel (0) target = $region29
    $region28: #{tpu_custom_call.1} parent=1 // pred_region
      %48 = dma.done [#allocation8], 768
    $region29: #{tpu_custom_call.1} parent=1 // pred_fallthru
      _
    // Predicated region
    $region30: #{tpu_custom_call.1} parent=1 // pred_check
      _
    $region31: #{tpu_custom_call.1} parent=1 // pred_check_branch
      %50 = sbr.rel (0) target = $region33
    $region32: #{tpu_custom_call.1} parent=1 // pred_region
      %52 = dma.done [#allocation10], 6144
    $region33: #{tpu_custom_call.1} parent=1 // pred_fallthru
      _
    %p53 = scmp.eq.s32.totalorder 0, 0
    // Predicated region
    $region34: #{tpu_custom_call.1} parent=1 // pred_check
      %p54 = pneg %p53
    $region35: #{tpu_custom_call.1} parent=1 // pred_check_branch
      %56 = sbr.rel (%p54) target = $region37
    $region36: #{tpu_custom_call.1} parent=1 // pred_region
      %vm57 = vcmask 7168
      %58 = vst.msk [vmem:[#allocation2] sm:$0xff] %vm57, -1e+30
      %59 = vst.msk [vmem:[#allocation4] sm:$0xff] %vm57, -1e+30
      %60 = vst.msk [vmem:[#allocation3] sm:$0xff] %vm57, 0.0
      %61 = vst.msk [vmem:[#allocation5] sm:$0xff] %vm57, 0.0
      %62 = vst.msk [vmem:[#allocation6] sm:$0xff] %vm57, 0.0
    $region37: #{tpu_custom_call.1} parent=1 // pred_fallthru
      _
    %v63 = vld [vmem:[#allocation7] sm:$0xff]
    %v64 = vld [vmem:[#allocation7 + $0x8] sm:$0xff]
    %v65 = vld [vmem:[#allocation7 + $0x10] sm:$0xff]
    %v66 = vld [vmem:[#allocation7 + $0x18] sm:$0xff]
    %v67 = vld [vmem:[#allocation7 + $0x20] sm:$0xff]
    %v68 = vld [vmem:[#allocation7 + $0x28] sm:$0xff]
    %v69 = vld [vmem:[%s3] sm:$0xf]
    %v70 = vld [vmem:[#allocation9] sm:$0xff]
    %v71 = vld [vmem:[#allocation9 + $0x8] sm:$0xff]
    %v72 = vld [vmem:[#allocation9 + $0x10] sm:$0xff]
    %v73 = vld [vmem:[#allocation9 + $0x18] sm:$0xff]
    %v74 = vld [vmem:[#allocation9 + $0x20] sm:$0xff]
    %v75 = vld [vmem:[#allocation9 + $0x28] sm:$0xff]
    %v76 = vld [vmem:[#allocation9 + $0x30] sm:$0xff]
    %v77 = vld [vmem:[#allocation9 + $0x38] sm:$0xff]
    %v78 = vld [vmem:[#allocation9 + $0x40] sm:$0xff]
    %v79 = vld [vmem:[#allocation9 + $0x48] sm:$0xff]
    %v80 = vld [vmem:[#allocation9 + $0x50] sm:$0xff]
    %v81 = vld [vmem:[#allocation9 + $0x58] sm:$0xff]
    %v82 = vld [vmem:[#allocation9 + $0x60] sm:$0xff]
    %v83 = vld [vmem:[#allocation9 + $0x68] sm:$0xff]
    %v84 = vld [vmem:[#allocation9 + $0x70] sm:$0xff]
    %v85 = vld [vmem:[#allocation9 + $0x78] sm:$0xff]
    %v86 = vld [vmem:[#allocation9 + $0x80] sm:$0xff]
    %v87 = vld [vmem:[#allocation9 + $0x88] sm:$0xff]
    %v88 = vld [vmem:[#allocation9 + $0x90] sm:$0xff]
    %v89 = vld [vmem:[#allocation9 + $0x98] sm:$0xff]
    %v90 = vld [vmem:[#allocation9 + $0xa0] sm:$0xff]
    %v91 = vld [vmem:[#allocation9 + $0xa8] sm:$0xff]
    %v92 = vld [vmem:[#allocation9 + $0xb0] sm:$0xff]
    %v93 = vld [vmem:[#allocation9 + $0xb8] sm:$0xff]
    %v94 = vld [vmem:[#allocation9 + $0xc0] sm:$0xff]
    %v95 = vld [vmem:[#allocation9 + $0xc8] sm:$0xff]
    %v96 = vld [vmem:[#allocation9 + $0xd0] sm:$0xff]
    %v97 = vld [vmem:[#allocation9 + $0xd8] sm:$0xff]
    %v98 = vld [vmem:[#allocation9 + $0xe0] sm:$0xff]
    %v99 = vld [vmem:[#allocation9 + $0xe8] sm:$0xff]
    %v100 = vld [vmem:[#allocation9 + $0xf0] sm:$0xff]
    %v101 = vld [vmem:[#allocation9 + $0xf8] sm:$0xff]
    %v102 = vld [vmem:[#allocation9 + $0x100] sm:$0xff]
    %v103 = vld [vmem:[#allocation9 + $0x108] sm:$0xff]
    %v104 = vld [vmem:[#allocation9 + $0x110] sm:$0xff]
    %v105 = vld [vmem:[#allocation9 + $0x118] sm:$0xff]
    %v106 = vld [vmem:[#allocation9 + $0x120] sm:$0xff]
    %v107 = vld [vmem:[#allocation9 + $0x128] sm:$0xff]
    %v108 = vld [vmem:[#allocation9 + $0x130] sm:$0xff]
    %v109 = vld [vmem:[#allocation9 + $0x138] sm:$0xff]
    %v110 = vld [vmem:[#allocation9 + $0x140] sm:$0xff]
    %v111 = vld [vmem:[#allocation9 + $0x148] sm:$0xff]
    %v112 = vld [vmem:[#allocation9 + $0x150] sm:$0xff]
    %v113 = vld [vmem:[#allocation9 + $0x158] sm:$0xff]
    %v114 = vld [vmem:[#allocation9 + $0x160] sm:$0xff]
    %v115 = vld [vmem:[#allocation9 + $0x168] sm:$0xff]
    %v116 = vld [vmem:[#allocation9 + $0x170] sm:$0xff]
    %v117 = vld [vmem:[#allocation9 + $0x178] sm:$0xff]
    %v118 = vld [vmem:[%s5] sm:$0x3f]
    %v120 = vperm.slane %v118, 0
    %v121 = vperm.slane %v118, 1
    %v122 = vperm.slane %v118, 2
    %v123 = vperm.slane %v118, 3
    %v124 = vperm.slane %v118, 4
    %v125 = vperm.slane %v118, 5
    %v180 = vunpack.c.l.b16 %v70
    %v181 = vunpack.c.h.b16 %v70
    %v182 = vunpack.c.l.b16 %v71
    %v183 = vunpack.c.h.b16 %v71
    %v184 = vunpack.c.l.b16 %v72
    %v185 = vunpack.c.h.b16 %v72
    %v186 = vunpack.c.l.b16 %v73
    %v187 = vunpack.c.h.b16 %v73
    %v188 = vunpack.c.l.b16 %v74
    %v189 = vunpack.c.h.b16 %v74
    %v190 = vunpack.c.l.b16 %v75
    %v191 = vunpack.c.h.b16 %v75
    %v192 = vunpack.c.l.b16 %v76
    %v193 = vunpack.c.h.b16 %v76
    %v194 = vunpack.c.l.b16 %v77
    %v195 = vunpack.c.h.b16 %v77
    %v196 = vunpack.c.l.b16 %v78
    %v197 = vunpack.c.h.b16 %v78
    %v198 = vunpack.c.l.b16 %v79
    %v199 = vunpack.c.h.b16 %v79
    %v200 = vunpack.c.l.b16 %v80
    %v201 = vunpack.c.h.b16 %v80
    %v202 = vunpack.c.l.b16 %v81
    %v203 = vunpack.c.h.b16 %v81
    %v204 = vunpack.c.l.b16 %v82
    %v205 = vunpack.c.h.b16 %v82
    %v206 = vunpack.c.l.b16 %v83
    %v207 = vunpack.c.h.b16 %v83
    %v208 = vunpack.c.l.b16 %v84
    %v209 = vunpack.c.h.b16 %v84
    %v210 = vunpack.c.l.b16 %v85
    %v211 = vunpack.c.h.b16 %v85
    %v212 = vunpack.c.l.b16 %v86
    %v213 = vunpack.c.h.b16 %v86
    %v214 = vunpack.c.l.b16 %v87
    %v215 = vunpack.c.h.b16 %v87
    %v216 = vunpack.c.l.b16 %v88
    %v217 = vunpack.c.h.b16 %v88
    %v218 = vunpack.c.l.b16 %v89
    %v219 = vunpack.c.h.b16 %v89
    %v220 = vunpack.c.l.b16 %v90
    %v221 = vunpack.c.h.b16 %v90
    %v222 = vunpack.c.l.b16 %v91
    %v223 = vunpack.c.h.b16 %v91
    %v224 = vunpack.c.l.b16 %v92
    %v225 = vunpack.c.h.b16 %v92
    %v226 = vunpack.c.l.b16 %v93
    %v227 = vunpack.c.h.b16 %v93
    %v228 = vunpack.c.l.b16 %v94
    %v229 = vunpack.c.h.b16 %v94
    %v230 = vunpack.c.l.b16 %v95
    %v231 = vunpack.c.h.b16 %v95
    %v232 = vunpack.c.l.b16 %v96
    %v233 = vunpack.c.h.b16 %v96
    %v234 = vunpack.c.l.b16 %v97
    %v235 = vunpack.c.h.b16 %v97
    %v236 = vunpack.c.l.b16 %v98
    %v237 = vunpack.c.h.b16 %v98
    %v238 = vunpack.c.l.b16 %v99
    %v239 = vunpack.c.h.b16 %v99
    %v240 = vunpack.c.l.b16 %v100
    %v241 = vunpack.c.h.b16 %v100
    %v242 = vunpack.c.l.b16 %v101
    %v243 = vunpack.c.h.b16 %v101
    %v244 = vunpack.c.l.b16 %v102
    %v245 = vunpack.c.h.b16 %v102
    %v246 = vunpack.c.l.b16 %v103
    %v247 = vunpack.c.h.b16 %v103
    %v248 = vunpack.c.l.b16 %v104
    %v249 = vunpack.c.h.b16 %v104
    %v250 = vunpack.c.l.b16 %v105
    %v251 = vunpack.c.h.b16 %v105
    %v252 = vunpack.c.l.b16 %v106
    %v253 = vunpack.c.h.b16 %v106
    %v254 = vunpack.c.l.b16 %v107
    %v255 = vunpack.c.h.b16 %v107
    %v256 = vunpack.c.l.b16 %v108
    %v257 = vunpack.c.h.b16 %v108
    %v258 = vunpack.c.l.b16 %v109
    %v259 = vunpack.c.h.b16 %v109
    %v260 = vunpack.c.l.b16 %v110
    %v261 = vunpack.c.h.b16 %v110
    %v262 = vunpack.c.l.b16 %v111
    %v263 = vunpack.c.h.b16 %v111
    %v264 = vunpack.c.l.b16 %v112
    %v265 = vunpack.c.h.b16 %v112
    %v266 = vunpack.c.l.b16 %v113
    %v267 = vunpack.c.h.b16 %v113
    %v268 = vunpack.c.l.b16 %v114
    %v269 = vunpack.c.h.b16 %v114
    %v270 = vunpack.c.l.b16 %v115
    %v271 = vunpack.c.h.b16 %v115
    %v272 = vunpack.c.l.b16 %v116
    %v273 = vunpack.c.h.b16 %v116
    %v274 = vunpack.c.l.b16 %v117
    %v275 = vunpack.c.h.b16 %v117
    %v276 = vpack.c.b16 %v186, %v180
    %v277 = vpack.c.b16 %v187, %v181
    %v278 = vpack.c.b16 %v188, %v182
    %v279 = vpack.c.b16 %v189, %v183
    %v280 = vpack.c.b16 %v190, %v184
    %v281 = vpack.c.b16 %v191, %v185
    %v282 = vpack.c.b16 %v198, %v192
    %v283 = vpack.c.b16 %v199, %v193
    %v284 = vpack.c.b16 %v200, %v194
    %v285 = vpack.c.b16 %v201, %v195
    %v286 = vpack.c.b16 %v202, %v196
    %v287 = vpack.c.b16 %v203, %v197
    %v288 = vpack.c.b16 %v210, %v204
    %v289 = vpack.c.b16 %v211, %v205
    %v290 = vpack.c.b16 %v212, %v206
    %v291 = vpack.c.b16 %v213, %v207
    %v292 = vpack.c.b16 %v214, %v208
    %v293 = vpack.c.b16 %v215, %v209
    %v294 = vpack.c.b16 %v222, %v216
    %v295 = vpack.c.b16 %v223, %v217
    %v296 = vpack.c.b16 %v224, %v218
    %v297 = vpack.c.b16 %v225, %v219
    %v298 = vpack.c.b16 %v226, %v220
    %v299 = vpack.c.b16 %v227, %v221
    %v300 = vpack.c.b16 %v234, %v228
    %v301 = vpack.c.b16 %v235, %v229
    %v302 = vpack.c.b16 %v236, %v230
    %v303 = vpack.c.b16 %v237, %v231
    %v304 = vpack.c.b16 %v238, %v232
    %v305 = vpack.c.b16 %v239, %v233
    %v306 = vpack.c.b16 %v246, %v240
    %v307 = vpack.c.b16 %v247, %v241
    %v308 = vpack.c.b16 %v248, %v242
    %v309 = vpack.c.b16 %v249, %v243
    %v310 = vpack.c.b16 %v250, %v244
    %v311 = vpack.c.b16 %v251, %v245
    %v312 = vpack.c.b16 %v258, %v252
    %v313 = vpack.c.b16 %v259, %v253
    %v314 = vpack.c.b16 %v260, %v254
    %v315 = vpack.c.b16 %v261, %v255
    %v316 = vpack.c.b16 %v262, %v256
    %v317 = vpack.c.b16 %v263, %v257
    %v318 = vpack.c.b16 %v270, %v264
    %v319 = vpack.c.b16 %v271, %v265
    %v320 = vpack.c.b16 %v272, %v266
    %v321 = vpack.c.b16 %v273, %v267
    %v322 = vpack.c.b16 %v274, %v268
    %v323 = vpack.c.b16 %v275, %v269
    %372 = vmatpush.bf16.msra.mxu0 %v318
    %373 = vmatpush.bf16.msra.mxu0 %v312
    %374 = vmatpush.bf16.msra.mxu0 %v306
    %375 = vmatpush.bf16.msra.mxu0 %v300
    %376 = vmatpush.bf16.msra.mxu0 %v294
    %377 = vmatpush.bf16.msra.mxu0 %v288
    %378 = vmatpush.bf16.msra.mxu0 %v282
    %379 = vmatpush.bf16.msra.mxu0 %v276
    %380 = vmatmul.bf16.gmra.mxu0 %v69
    %v381 = vpop.f32.mrf.mxu0
    %v382 = vadd.f32 %v120, %v381
    %v383 = vpop.f32.mrf.mxu0
    %384 = vdwg.mxu0
    %385 = vmatpush.bf16.msra.mxu0 %v319
    %386 = vmatpush.bf16.msra.mxu0 %v313
    %387 = vmatpush.bf16.msra.mxu0 %v307
    %388 = vmatpush.bf16.msra.mxu0 %v301
    %389 = vmatpush.bf16.msra.mxu0 %v295
    %390 = vmatpush.bf16.msra.mxu0 %v289
    %391 = vmatpush.bf16.msra.mxu0 %v283
    %392 = vmatpush.bf16.msra.mxu0 %v277
    %393 = vmatmul.bf16.gmra.mxu0 %v69
    %v394 = vpop.f32.mrf.mxu0
    %v395 = vadd.f32 %v121, %v394
    %v396 = vpop.f32.mrf.mxu0
    %397 = vdwg.mxu0
    %398 = vmatpush.bf16.msra.mxu0 %v320
    %399 = vmatpush.bf16.msra.mxu0 %v314
    %400 = vmatpush.bf16.msra.mxu0 %v308
    %401 = vmatpush.bf16.msra.mxu0 %v302
    %402 = vmatpush.bf16.msra.mxu0 %v296
    %403 = vmatpush.bf16.msra.mxu0 %v290
    %404 = vmatpush.bf16.msra.mxu0 %v284
    %405 = vmatpush.bf16.msra.mxu0 %v278
    %406 = vmatmul.bf16.gmra.mxu0 %v69
    %v407 = vpop.f32.mrf.mxu0
    %v408 = vadd.f32 %v122, %v407
    %v409 = vpop.f32.mrf.mxu0
    %410 = vdwg.mxu0
    %411 = vmatpush.bf16.msra.mxu0 %v321
    %412 = vmatpush.bf16.msra.mxu0 %v315
    %413 = vmatpush.bf16.msra.mxu0 %v309
    %414 = vmatpush.bf16.msra.mxu0 %v303
    %415 = vmatpush.bf16.msra.mxu0 %v297
    %416 = vmatpush.bf16.msra.mxu0 %v291
    %417 = vmatpush.bf16.msra.mxu0 %v285
    %418 = vmatpush.bf16.msra.mxu0 %v279
    %419 = vmatmul.bf16.gmra.mxu0 %v69
    %v420 = vpop.f32.mrf.mxu0
    %v421 = vadd.f32 %v123, %v420
    %v422 = vpop.f32.mrf.mxu0
    %423 = vdwg.mxu0
    %424 = vmatpush.bf16.msra.mxu0 %v322
    %425 = vmatpush.bf16.msra.mxu0 %v316
    %426 = vmatpush.bf16.msra.mxu0 %v310
    %427 = vmatpush.bf16.msra.mxu0 %v304
    %428 = vmatpush.bf16.msra.mxu0 %v298
    %429 = vmatpush.bf16.msra.mxu0 %v292
    %430 = vmatpush.bf16.msra.mxu0 %v286
    %431 = vmatpush.bf16.msra.mxu0 %v280
    %432 = vmatmul.bf16.gmra.mxu0 %v69
    %v433 = vpop.f32.mrf.mxu0
    %v434 = vadd.f32 %v124, %v433
    %v435 = vpop.f32.mrf.mxu0
    %436 = vdwg.mxu0
    %437 = vmatpush.bf16.msra.mxu0 %v323
    %438 = vmatpush.bf16.msra.mxu0 %v317
    %439 = vmatpush.bf16.msra.mxu0 %v311
    %440 = vmatpush.bf16.msra.mxu0 %v305
    %441 = vmatpush.bf16.msra.mxu0 %v299
    %442 = vmatpush.bf16.msra.mxu0 %v293
    %443 = vmatpush.bf16.msra.mxu0 %v287
    %444 = vmatpush.bf16.msra.mxu0 %v281
    %445 = vmatmul.bf16.gmra.mxu0 %v69
    %v446 = vpop.f32.mrf.mxu0
    %v447 = vadd.f32 %v125, %v446
    %v448 = vpop.f32.mrf.mxu0
    %449 = vdwg.mxu0
    %v450 = vlaneseq
    %v451 = vand.u32 %v450, 127
    %v452 = vadd.s32 %v451, 128
    %v453 = vadd.s32 %v451, 256
    %v454 = vadd.s32 %v451, 384
    %v455 = vadd.s32 %v451, 512
    %v456 = vadd.s32 %v451, 640
    %v457 = vld [vmem:[%s1] sm:$0xff]
    %s458 = smul.u32 0, 768
    %v459 = vstv %s458
    %v460 = vsub.s32 %v457, %v459
    %461 = vset.pattern.permute.xlu0 0
    %462 = vperm.xlu0 %461, %v460
    %v463 = vpop.permute.xlu0 %462
    %vm464 = vcmp.eq.s32.totalorder %v451, %v463
    %vm465 = vcmp.eq.s32.totalorder %v452, %v463
    %vm466 = vcmp.eq.s32.totalorder %v453, %v463
    %vm467 = vcmp.eq.s32.totalorder %v454, %v463
    %vm468 = vcmp.eq.s32.totalorder %v455, %v463
    %vm469 = vcmp.eq.s32.totalorder %v456, %v463
    %v470 = vsel %vm464, -1e+30, %v382
    %v471 = vsel %vm465, -1e+30, %v395
    %v472 = vsel %vm466, -1e+30, %v408
    %v473 = vsel %vm467, -1e+30, %v421
    %v474 = vsel %vm468, -1e+30, %v434
    %v475 = vsel %vm469, -1e+30, %v447
    %v476 = vld [vmem:[#allocation2] sm:$0xff]
    %v477 = vmax.f32 %v63, %v67
    %v478 = vmax.f32 %v64, %v68
    %v479 = vmax.f32 %v477, %v478
    %v480 = vmax.f32 %v65, %v66
    %v481 = vmax.f32 %v479, %v480
    %482 = vmax.xlane.f32.xlu0 %v481
    %v483 = vpop.xlane.xlu0 %482
    %v484 = vmax.f32 %v476, %v483
    %v485 = vsub.f32 %v476, %v484
    %v486 = vmul.f32 %v485, 1.442695
    %v487 = vpow.pop %v486
    %v488 = vld [vmem:[#allocation3] sm:$0xff]
    %v489 = vmul.f32 %v487, %v488
    %491 = vset.pattern.permute.xlu0 0
    %492 = vperm.xlu0 %491, %v484
    %v493 = vpop.permute.xlu0 %492
    %v495 = vsub.f32 %v63, %v493
    %v496 = vsub.f32 %v64, %v493
    %v497 = vsub.f32 %v65, %v493
    %v498 = vsub.f32 %v66, %v493
    %v499 = vsub.f32 %v67, %v493
    %v500 = vsub.f32 %v68, %v493
    %v501 = vmul.f32 %v495, 1.442695
    %v502 = vpow.pop %v501
    %v503 = vmul.f32 %v496, 1.442695
    %v504 = vpow.pop %v503
    %v505 = vmul.f32 %v497, 1.442695
    %v506 = vpow.pop %v505
    %v507 = vmul.f32 %v498, 1.442695
    %v508 = vpow.pop %v507
    %v509 = vmul.f32 %v499, 1.442695
    %v510 = vpow.pop %v509
    %v511 = vmul.f32 %v500, 1.442695
    %v512 = vpow.pop %v511
    %v513 = vadd.f32 %v502, %v504
    %v514 = vadd.f32 %v513, %v506
    %v515 = vadd.f32 %v514, %v508
    %v516 = vadd.f32 %v515, %v510
    %v517 = vadd.f32 %v516, %v512
    %518 = vadd.xlane.f32.xlu0 %v517
    %v519 = vpop.xlane.xlu0 %518
    %v520 = vadd.f32 %v489, %v519
    %vm521 = vcmask 7168
    %522 = vst.msk [vmem:[#allocation3] sm:$0xff] %vm521, %v520
    %523 = vst.msk [vmem:[#allocation2] sm:$0xff] %vm521, %v484
    %v524 = vld [vmem:[#allocation4] sm:$0xff]
    %v525 = vmax.f32 %v470, %v474
    %v526 = vmax.f32 %v471, %v475
    %v527 = vmax.f32 %v525, %v526
    %v528 = vmax.f32 %v472, %v473
    %v529 = vmax.f32 %v527, %v528
    %530 = vmax.xlane.f32.xlu0 %v529
    %v531 = vpop.xlane.xlu0 %530
    %v532 = vmax.f32 %v524, %v531
    %v533 = vsub.f32 %v524, %v532
    %v534 = vmul.f32 %v533, 1.442695
    %v535 = vpow.pop %v534
    %537 = vset.pattern.permute.xlu0 0
    %538 = vperm.xlu0 %537, %v532
    %v539 = vpop.permute.xlu0 %538
    %v541 = vsub.f32 %v470, %v539
    %v542 = vsub.f32 %v471, %v539
    %v543 = vsub.f32 %v472, %v539
    %v544 = vsub.f32 %v473, %v539
    %v545 = vsub.f32 %v474, %v539
    %v546 = vsub.f32 %v475, %v539
    %v547 = vmul.f32 %v541, 1.442695
    %v548 = vpow.pop %v547
    %v549 = vmul.f32 %v542, 1.442695
    %v550 = vpow.pop %v549
    %v551 = vmul.f32 %v543, 1.442695
    %v552 = vpow.pop %v551
    %v553 = vmul.f32 %v544, 1.442695
    %v554 = vpow.pop %v553
    %v555 = vmul.f32 %v545, 1.442695
    %v556 = vpow.pop %v555
    %v557 = vmul.f32 %v546, 1.442695
    %v558 = vpow.pop %v557
    %v559 = vld [vmem:[#allocation5] sm:$0xff]
    %v560 = vmul.f32 %v535, %v559
    %v561 = vadd.f32 %v548, %v550
    %v562 = vadd.f32 %v561, %v552
    %v563 = vadd.f32 %v562, %v554
    %v564 = vadd.f32 %v563, %v556
    %v565 = vadd.f32 %v564, %v558
    %566 = vadd.xlane.f32.xlu0 %v565
    %v567 = vpop.xlane.xlu0 %566
    %v568 = vadd.f32 %v560, %v567
    %569 = vst.msk [vmem:[#allocation5] sm:$0xff] %vm521, %v568
    %v570 = vld [vmem:[#allocation6] sm:$0xff]
    %v571 = vmul.f32 %v535, %v570
    %v572 = vmul.f32 %v548, %v63
    %v573 = vmul.f32 %v550, %v64
    %v574 = vmul.f32 %v552, %v65
    %v575 = vmul.f32 %v554, %v66
    %v576 = vmul.f32 %v556, %v67
    %v577 = vmul.f32 %v558, %v68
    %v578 = vadd.f32 %v572, %v573
    %v579 = vadd.f32 %v578, %v574
    %v580 = vadd.f32 %v579, %v575
    %v581 = vadd.f32 %v580, %v576
    %v582 = vadd.f32 %v581, %v577
    %583 = vadd.xlane.f32.xlu0 %v582
    %v584 = vpop.xlane.xlu0 %583
    %v585 = vadd.f32 %v571, %v584
    %586 = vst.msk [vmem:[#allocation6] sm:$0xff] %vm521, %v585
    %587 = vst.msk [vmem:[#allocation4] sm:$0xff] %vm521, %v532
    // Predicated region
    $region38: #{tpu_custom_call.1} parent=1 // pred_check
      %p588 = pneg %p53
    $region39: #{tpu_custom_call.1} parent=1 // pred_check_branch
      %590 = sbr.rel (%p588) target = $region41
    $region40: #{tpu_custom_call.1} parent=1 // pred_region
      %v591 = vld [vmem:[#allocation2] sm:$0xff]
      %v592 = vld [vmem:[#allocation3] sm:$0xff]
      %v593 = vlog2.pop %v592
      %v594 = vmul.f32 %v593, 0.6931472
      %v595 = vadd.f32 %v591, %v594
      %v596 = vld [vmem:[#allocation6] sm:$0xff]
      %v597 = vld [vmem:[#allocation5] sm:$0xff]
      %v598 = vmax.f32 %v597, 1e-30
      %v599 = vrcp.pop %v598
      %v600 = vmul.f32 %v598, %v599
      %v601 = vsub.f32 1.0, %v600
      %v602 = vmul.f32 %v599, %v601
      %v603 = vadd.f32 %v599, %v602
      %vm604 = vweird.f32 %v598
      %vm605 = vweird.f32 %v599
      %vm606 = vmor %vm604, %vm605
      %v607 = vsel %vm606, %v599, %v603
      %v608 = vand.u32 2147483647, %v598
      %vm609 = vcmp.eq.f32.partialorder %v608, 8.507059e+37
      %v610 = vand.u32 %v598, 2147483648
      %v611 = vor.u32 1.1754944e-38, %v610
      %v612 = vsel %vm609, %v611, %v607
      %v613 = vmul.f32 %v596, %v612
      %v614 = vld [vmem:[%s2] sm:$0xff]
      %v615 = vmul.f32 %v614, 0.8
      %v616 = vsub.f32 %v595, %v615
      %v617 = vmul.f32 %v613, 0.2
      %v618 = vsub.f32 %v616, %v617
      %619 = vst.msk [vmem:[%s6] sm:$0xff] %vm521, %v618
    $region41: #{tpu_custom_call.1} parent=1 // pred_fallthru
      _
    // Predicated region
    $region42: #{tpu_custom_call.1} parent=1 // pred_check
      _
    $region43: #{tpu_custom_call.1} parent=1 // pred_check_branch
      %621 = sbr.rel (0) target = $region45
    $region44: #{tpu_custom_call.1} parent=1 // pred_region
      _
    $region45: #{tpu_custom_call.1} parent=1 // pred_fallthru
      _
    // Predicated region
    $region46: #{tpu_custom_call.1} parent=1 // pred_check
      _
    $region47: #{tpu_custom_call.1} parent=1 // pred_check_branch
      %623 = sbr.rel (0) target = $region49
    $region48: #{tpu_custom_call.1} parent=1 // pred_region
      _
    $region49: #{tpu_custom_call.1} parent=1 // pred_fallthru
      _
    %624 = vsyncpa [#allocation8], 1
    %625 = vsyncpa [#allocation10], 1

</llo_original>
